<compile_context>
chip_gen: v5e
topology: v5e:2x2
jax: 0.10.0
libtpu: 0.0.40
codegen_flags: <defaults>
</compile_context>

<pallas_src>
from collections import namedtuple

import jax
import jax.numpy as jnp
from jax.experimental import pallas as pl
from jax.experimental.pallas import tpu as pltpu


def _round_up(x, m):
    return ((x + m - 1) // m) * m


_LayerSpec = namedtuple("_LayerSpec", ["skip", "ln", "k_out", "b_row", "g_row", "be_row"])


# -----------------------------------------------------------------------------
# Best-effort chip introspection (never fatal)
# -----------------------------------------------------------------------------
def _tpu_chip_info():
    """Returns (tensorcores_per_device, physical_vmem_bytes) with safe fallbacks."""
    num_tc = 1
    vmem_cap = 64 << 20  # conservative default = v7x per-TC VMEM
    try:
        info = pltpu.get_tpu_info()
        for name in ("vmem_capacity_bytes", "vmem_bytes", "vmem_size_bytes"):
            v = getattr(info, name, None)
            if v:
                vmem_cap = int(v)
                break
        for name in ("num_cores", "tensorcore_count", "num_tensorcores"):
            v = getattr(info, name, None)
            if v:
                num_tc = int(v)
                break
    except Exception:
        pass
    try:
        kind = jax.devices()[0].device_kind.lower()
        if any(tag in kind for tag in ("v4", "v5p", "v7")):
            num_tc = max(num_tc, 2)
    except Exception:
        pass
    return num_tc, vmem_cap


# -----------------------------------------------------------------------------
# Kernel
# -----------------------------------------------------------------------------
def _make_mlp_kernel(layer_specs, ln_eps, compute_dtype):
    """Full MLP forward on one row tile.

    Ref order: x_ref, vec_ref (packed bias/gamma/beta table),
               per-layer weight refs (skip layers contribute W_feat, W_x), out_ref.
    """
    num_layers = len(layer_specs)

    def kernel(*refs):
        x_ref = refs[0]
        vec_ref = refs[1]
        w_refs = refs[2:-1]
        out_ref = refs[-1]

        # Cast the input tile once; reused by every skip layer (no-op if already bf16).
        x_cmp = x_ref[...].astype(compute_dtype)
        feat_cmp = x_cmp

        wi = 0
        for li, spec in enumerate(layer_specs):
            k_out = spec.k_out

            if spec.skip:
                # concat([feat, x]) @ W == feat @ W_feat + x @ W_x  (no lane concat)
                w_feat = w_refs[wi][...]
                w_x = w_refs[wi + 1][...]
                wi += 2
                acc = jnp.dot(feat_cmp, w_feat, preferred_element_type=jnp.float32)
                acc = acc + jnp.dot(x_cmp, w_x, preferred_element_type=jnp.float32)
            else:
                w = w_refs[wi][...]
                wi += 1
                acc = jnp.dot(feat_cmp, w, preferred_element_type=jnp.float32)

            acc = acc + vec_ref[spec.b_row:spec.b_row + 1, :k_out]   # (1, k_out) f32

            if li != num_layers - 1:
                if spec.ln:
                    gamma = vec_ref[spec.g_row:spec.g_row + 1, :k_out]
                    beta = vec_ref[spec.be_row:spec.be_row + 1, :k_out]
                    inv_k = 1.0 / k_out
                    # single-pass stats: var = E[x^2] - mean^2
                    mean = jnp.sum(acc, axis=-1, keepdims=True) * inv_k
                    ex2 = jnp.sum(acc * acc, axis=-1, keepdims=True) * inv_k
                    rstd = jax.lax.rsqrt(ex2 - mean * mean + ln_eps)
                    scale = rstd * gamma                      # fold gamma into rstd
                    acc = acc * scale + (beta - mean * scale)
                # activ = torch.nn.functional.relu_ (default); kept in f32.
                acc = jnp.maximum(acc, 0.0)
                feat_cmp = acc.astype(compute_dtype)
            else:
                # Lane-dense (TR, out_width) store; padded columns are exact zeros.
                out_ref[...] = acc.astype(out_ref.dtype)

    return kernel


# -----------------------------------------------------------------------------
# Wrapper
# -----------------------------------------------------------------------------
def mlp_with_skip_forward(x, params, layer_dims, skip_connection=(),
                          use_layernorm=False, tile_rows=4096,
                          compute_dtype=jnp.bfloat16, ln_eps=1e-5):
    """Run the MLP forward with a single pallas_call.

    Args:
      x: (..., layer_dims[0]) float32 or bfloat16 array.
      params: per-layer dict with 'w' (k_in, k_out) [already transposed], 'b' (k_out,),
              and optionally 'gamma'/'beta' (k_out,) when use_layernorm.
              NOTE: for skip layers the (k_in + d_in) weight rows must follow the
              module's concat order [feat, input] (true for init_params below; check
              this when importing real PyTorch weights, which are stored (out, in)).
    """
    num_layers = len(layer_dims) - 1
    d_in = layer_dims[0]
    d_out = layer_dims[-1]
    skip_connection = tuple(skip_connection)

    lead_shape = x.shape[:-1]
    xf = x.reshape(-1, d_in)
    n = xf.shape[0]
    out_dtype = x.dtype

    # Lane-dense final store width (>= 128 lanes, unmasked vst).
    out_width = _round_up(d_out, 128)

    # ---- pack parameters ----------------------------------------------------------
    vec_width = _round_up(max(layer_dims[1:]), 128)  # one lane-padded vector table
    vec_rows = []
    weights = []
    layer_specs = []

    def add_vec(v):
        v = jnp.asarray(v, jnp.float32).reshape(-1)
        v = jnp.pad(v, (0, vec_width - v.shape[0]))
        vec_rows.append(v)
        return len(vec_rows) - 1

    for li in range(num_layers):
        is_last = li == num_layers - 1
        k_out = layer_dims[li + 1]
        w = jnp.asarray(params[li]["w"], jnp.float32)
        if is_last and out_width != k_out:
            w = jnp.pad(w, ((0, 0), (0, out_width - k_out)))   # zero-padded columns
            k_out_eff = out_width
        else:
            k_out_eff = k_out
        is_skip = li in skip_connection
        if is_skip:
            k_feat = layer_dims[li]                  # width of `feat` entering the layer
            weights.append(w[:k_feat].astype(compute_dtype))   # acts on feat
            weights.append(w[k_feat:].astype(compute_dtype))   # acts on original input
        else:
            weights.append(w.astype(compute_dtype))
        b_row = add_vec(params[li]["b"])
        has_ln = bool(use_layernorm) and not is_last
        if has_ln:
            g_row = add_vec(params[li]["gamma"])
            be_row = add_vec(params[li]["beta"])
        else:
            g_row = be_row = -1
        layer_specs.append(_LayerSpec(is_skip, has_ln, k_out_eff, b_row, g_row, be_row))

    vecs = jnp.stack(vec_rows, axis=0)               # (n_vecs, vec_width) f32
    param_bytes = int(vecs.size) * vecs.dtype.itemsize + sum(
        int(w.size) * w.dtype.itemsize for w in weights)

    # ---- row tiling: big tiles, no wrapper-side pad copy --------------------------
    num_tc, vmem_cap = _tpu_chip_info()

    tr0 = max(8, _round_up(min(int(tile_rows), n), 8))
    num_steps = pl.cdiv(n, tr0)
    if num_tc >= 2:                                  # only v4/v5p/v7x have 2 TCs/device
        if num_steps == 1 and n > 16:
            num_steps = 2                            # let both TensorCores work
        elif num_steps > 1 and num_steps % 2 != 0:
            num_steps += 1                           # even steps -> balanced split
    tr = _round_up(pl.cdiv(n, num_steps), 8)

    # keep the per-step working set inside a conservative VMEM budget
    xb = xf.dtype.itemsize
    ob = jnp.dtype(out_dtype).itemsize
    cb = jnp.dtype(compute_dtype).itemsize
    max_w = max(max(layer_dims[1:]), out_width)
    vmem_budget = min(48 << 20, int(0.75 * vmem_cap))   # < 64 MiB: v7x headroom

    def _vmem_est(t):
        io = 2 * t * d_in * xb + 2 * t * out_width * ob       # double-buffered IO
        live = 4 * t * max_w * 4 + 2 * t * d_in * cb          # live f32/bf16 temps
        return 2 * param_bytes + io + live

    while tr > 64 and _vmem_est(tr) > vmem_budget:
        tr = max(64, _round_up(tr // 2, 8))

    if tr >= n:
        tr, grid_steps = n, 1          # single full-extent block (always layout-legal)
    else:
        grid_steps = pl.cdiv(n, tr)    # last block may be partial; Pallas masks it

    vmem_est = _vmem_est(tr)

    # ---- specs ---------------------------------------------------------------------
    flat_inputs = [xf, vecs]
    in_specs = [pl.BlockSpec((tr, d_in), lambda i: (i, 0)),
                pl.BlockSpec(vecs.shape, lambda i: (0, 0))]
    for w in weights:
        flat_inputs.append(w)
        in_specs.append(pl.BlockSpec(w.shape, lambda i: (0, 0)))

    kernel = _make_mlp_kernel(tuple(layer_specs), ln_eps, compute_dtype)

    cparams = dict(dimension_semantics=("parallel",))
    if vmem_est > (16 << 20):                        # v5e default scoped-VMEM limit
        cparams["vmem_limit_bytes"] = int(min(vmem_est + (8 << 20), vmem_budget))

    # advisory cost estimate for the XLA scheduler
    flops = 0
    for li in range(num_layers):
        k_in_eff = layer_dims[li] + (d_in if li in skip_connection else 0)
        k_out_eff = out_width if li == num_layers - 1 else layer_dims[li + 1]
        flops += 2 * n * k_in_eff * k_out_eff
    transcendentals = n * sum(1 for s in layer_specs if s.ln)
    bytes_accessed = (n * d_in * xb + n * out_width * ob + param_bytes)
    cost = pl.CostEstimate(flops=int(flops), transcendentals=int(transcendentals),
                           bytes_accessed=int(bytes_accessed))

    out = pl.pallas_call(
        kernel,
        out_shape=jax.ShapeDtypeStruct((n, out_width), out_dtype),
        grid_spec=pltpu.PrefetchScalarGridSpec(
            num_scalar_prefetch=0,
            grid=(grid_steps,),
            in_specs=in_specs,
            out_specs=pl.BlockSpec((tr, out_width), lambda i: (i, 0)),
        ),
        compiler_params=pltpu.CompilerParams(**cparams),
        cost_estimate=cost,
    )(*flat_inputs)

    if out_width != d_out:
        out = out[:, :d_out]
    return out.reshape(*lead_shape, d_out)


# -----------------------------------------------------------------------------
# Deterministic parameter init (mimics torch.nn.Linear default init shapes)
# -----------------------------------------------------------------------------
def init_params(key, layer_dims, skip_connection=(), use_layernorm=False):
    num_layers = len(layer_dims) - 1
    params = []
    pairs = list(zip(layer_dims[:-1], layer_dims[1:]))
    for li, (k_in, k_out) in enumerate(pairs):
        if li in skip_connection:
            k_in += layer_dims[0]
        key, kw, kb = jax.random.split(key, 3)
        bound = 1.0 / jnp.sqrt(k_in)
        # stored already transposed: (k_in, k_out) so forward does x @ W
        w = jax.random.uniform(kw, (k_in, k_out), jnp.float32, -bound, bound)
        if li == num_layers - 1:
            b = jnp.zeros((k_out,), jnp.float32)     # module fills last bias with 0
        else:
            b = jax.random.uniform(kb, (k_out,), jnp.float32, -bound, bound)
        layer = {"w": w, "b": b}
        if use_layernorm and li != num_layers - 1:
            layer["gamma"] = jnp.ones((k_out,), jnp.float32)
            layer["beta"] = jnp.zeros((k_out,), jnp.float32)
        params.append(layer)
    return params
    # TODO(synk): use_weightnorm would fold g * v/||v|| into 'w' here.


# -----------------------------------------------------------------------------
# Pure-JAX references (mirror the PyTorch forward)
# -----------------------------------------------------------------------------
def mlp_reference(x, params, layer_dims, skip_connection=(), use_layernorm=False,
                  compute_dtype=None, ln_eps=1e-5):
    """compute_dtype=None -> pure f32; else cast matmul operands (matches the kernel)."""
    num_layers = len(layer_dims) - 1
    feat = x
    for li in range(num_layers):
        if li in skip_connection:
            feat = jnp.concatenate([feat, x], axis=-1)
        w = params[li]["w"]
        if compute_dtype is not None:
            feat = jnp.dot(feat.astype(compute_dtype), w.astype(compute_dtype),
                           preferred_element_type=jnp.float32) + params[li]["b"]
        else:
            feat = feat @ w + params[li]["b"]
        if li != num_layers - 1:
            if use_layernorm:
                mean = jnp.mean(feat, axis=-1, keepdims=True)
                var = jnp.mean((feat - mean) ** 2, axis=-1, keepdims=True)
                feat = (feat - mean) * jax.lax.rsqrt(var + ln_eps)
                feat = feat * params[li]["gamma"] + params[li]["beta"]
            feat = jax.nn.relu(feat)
    return feat


# -----------------------------------------------------------------------------
if __name__ == "__main__":
    # MLPwithSkipConnection(layer_dims=[32, 64, 64, 64, 16], skip_connection=[2])
    layer_dims = [32, 64, 64, 64, 16]
    skip_connection = (2,)

    key = jax.random.PRNGKey(0)

    configs = [
        # (use_layernorm, batch, n_pts, tile_rows)
        (False, 2, 64, 4096),   # 128 rows -> one (or two, on 2-TC chips) big tile(s)
        (True, 2, 60, 4096),    # 120 rows -> LayerNorm path
        (True, 2, 60, 64),      # forces a 2-step grid with a partial last block
    ]
    for use_layernorm, batch, n_pts, tile_rows in configs:
        key, kx, kp = jax.random.split(key, 3)
        x = jax.random.normal(kx, (batch, n_pts, layer_dims[0]), jnp.float32)
        params = init_params(kp, layer_dims, skip_connection, use_layernorm)

        out = mlp_with_skip_forward(x, params, layer_dims, skip_connection,
                                    use_layernorm=use_layernorm, tile_rows=tile_rows)
        out = jax.block_until_ready(out)
        assert out.shape == (batch, n_pts, layer_dims[-1])

        ref_mixed = mlp_reference(x, params, layer_dims, skip_connection,
                                  use_layernorm, compute_dtype=jnp.bfloat16)
        ref_f32 = mlp_reference(x, params, layer_dims, skip_connection, use_layernorm)
        assert jnp.allclose(out, ref_mixed, atol=1e-3, rtol=1e-3), \
            "mismatch vs matched-precision (bf16 matmul) reference"
        assert jnp.allclose(out, ref_f32, atol=6e-2, rtol=6e-2), \
            "mismatch vs full-f32 reference"

    print("KERNEL_OK")
</pallas_src>

<mosaic_0001>
module attributes {stable_mosaic.version = 11 : i64} {
  func.func @kernel(%arg0: i32, %arg1: memref<128x32xf32, #tpu.memory_space<vmem>>, %arg2: memref<4x128xf32, #tpu.memory_space<vmem>>, %arg3: memref<32x64xbf16, #tpu.memory_space<vmem>>, %arg4: memref<64x64xbf16, #tpu.memory_space<vmem>>, %arg5: memref<64x64xbf16, #tpu.memory_space<vmem>>, %arg6: memref<32x64xbf16, #tpu.memory_space<vmem>>, %arg7: memref<64x128xbf16, #tpu.memory_space<vmem>>, %arg8: memref<128x128xf32, #tpu.memory_space<vmem>>) attributes {dimension_semantics = [#tpu.dimension_semantics<parallel>], iteration_bounds = array<i64: 1>, scalar_prefetch = 0 : i64, scratch_operands = 0 : i64, tpu.core_type = #tpu.core_type<tc>, window_params = [{transform_indices = @transform_0, window_bounds = array<i64: 128, 32>}, {pipeline_mode = #tpu.pipeline_mode<synchronous>, transform_indices = @transform_1, window_bounds = array<i64: 4, 128>}, {pipeline_mode = #tpu.pipeline_mode<synchronous>, transform_indices = @transform_2, window_bounds = array<i64: 32, 64>}, {pipeline_mode = #tpu.pipeline_mode<synchronous>, transform_indices = @transform_3, window_bounds = array<i64: 64, 64>}, {pipeline_mode = #tpu.pipeline_mode<synchronous>, transform_indices = @transform_4, window_bounds = array<i64: 64, 64>}, {pipeline_mode = #tpu.pipeline_mode<synchronous>, transform_indices = @transform_5, window_bounds = array<i64: 32, 64>}, {pipeline_mode = #tpu.pipeline_mode<synchronous>, transform_indices = @transform_6, window_bounds = array<i64: 64, 128>}, {transform_indices = @transform_7, window_bounds = array<i64: 128, 128>}]} {
    %c0 = arith.constant 0 : index
    %c0_0 = arith.constant 0 : index
    %0 = vector.load %arg1[%c0, %c0_0] : memref<128x32xf32, #tpu.memory_space<vmem>>, vector<128x32xf32>
    %1 = arith.truncf %0 : vector<128x32xf32> to vector<128x32xbf16>
    %c0_1 = arith.constant 0 : index
    %c0_2 = arith.constant 0 : index
    %2 = vector.load %arg3[%c0_1, %c0_2] : memref<32x64xbf16, #tpu.memory_space<vmem>>, vector<32x64xbf16>
    %cst = arith.constant dense<0.000000e+00> : vector<128x64xf32>
    %3 = tpu.matmul %1, %2, %cst {dimension_numbers = #tpu.dot_dimension_numbers<[1], [0], [0], [1], [0, 0, 1, 1], [], []>} : vector<128x32xbf16>, vector<32x64xbf16>, vector<128x64xf32> -> vector<128x64xf32>
    %c0_3 = arith.constant 0 : index
    %c0_4 = arith.constant 0 : index
    %4 = vector.load %arg2[%c0_3, %c0_4] : memref<4x128xf32, #tpu.memory_space<vmem>>, vector<1x64xf32>
    %5 = vector.broadcast %4 : vector<1x64xf32> to vector<128x64xf32>
    %6 = arith.addf %3, %5 : vector<128x64xf32>
    %cst_5 = arith.constant 0.000000e+00 : f32
    %7 = vector.broadcast %cst_5 : f32 to vector<128x64xf32>
    %8 = arith.maximumf %6, %7 : vector<128x64xf32>
    %9 = arith.truncf %8 : vector<128x64xf32> to vector<128x64xbf16>
    %c0_6 = arith.constant 0 : index
    %c0_7 = arith.constant 0 : index
    %10 = vector.load %arg4[%c0_6, %c0_7] : memref<64x64xbf16, #tpu.memory_space<vmem>>, vector<64x64xbf16>
    %cst_8 = arith.constant dense<0.000000e+00> : vector<128x64xf32>
    %11 = tpu.matmul %9, %10, %cst_8 {dimension_numbers = #tpu.dot_dimension_numbers<[1], [0], [0], [1], [0, 0, 1, 1], [], []>} : vector<128x64xbf16>, vector<64x64xbf16>, vector<128x64xf32> -> vector<128x64xf32>
    %c1 = arith.constant 1 : index
    %c0_9 = arith.constant 0 : index
    %12 = vector.load %arg2[%c1, %c0_9] : memref<4x128xf32, #tpu.memory_space<vmem>>, vector<1x64xf32>
    %13 = vector.broadcast %12 : vector<1x64xf32> to vector<128x64xf32>
    %14 = arith.addf %11, %13 : vector<128x64xf32>
    %cst_10 = arith.constant 0.000000e+00 : f32
    %15 = vector.broadcast %cst_10 : f32 to vector<128x64xf32>
    %16 = arith.maximumf %14, %15 : vector<128x64xf32>
    %17 = arith.truncf %16 : vector<128x64xf32> to vector<128x64xbf16>
    %c0_11 = arith.constant 0 : index
    %c0_12 = arith.constant 0 : index
    %18 = vector.load %arg5[%c0_11, %c0_12] : memref<64x64xbf16, #tpu.memory_space<vmem>>, vector<64x64xbf16>
    %c0_13 = arith.constant 0 : index
    %c0_14 = arith.constant 0 : index
    %19 = vector.load %arg6[%c0_13, %c0_14] : memref<32x64xbf16, #tpu.memory_space<vmem>>, vector<32x64xbf16>
    %cst_15 = arith.constant dense<0.000000e+00> : vector<128x64xf32>
    %20 = tpu.matmul %17, %18, %cst_15 {dimension_numbers = #tpu.dot_dimension_numbers<[1], [0], [0], [1], [0, 0, 1, 1], [], []>} : vector<128x64xbf16>, vector<64x64xbf16>, vector<128x64xf32> -> vector<128x64xf32>
    %cst_16 = arith.constant dense<0.000000e+00> : vector<128x64xf32>
    %21 = tpu.matmul %1, %19, %cst_16 {dimension_numbers = #tpu.dot_dimension_numbers<[1], [0], [0], [1], [0, 0, 1, 1], [], []>} : vector<128x32xbf16>, vector<32x64xbf16>, vector<128x64xf32> -> vector<128x64xf32>
    %22 = arith.addf %20, %21 : vector<128x64xf32>
    %c2 = arith.constant 2 : index
    %c0_17 = arith.constant 0 : index
    %23 = vector.load %arg2[%c2, %c0_17] : memref<4x128xf32, #tpu.memory_space<vmem>>, vector<1x64xf32>
    %24 = vector.broadcast %23 : vector<1x64xf32> to vector<128x64xf32>
    %25 = arith.addf %22, %24 : vector<128x64xf32>
    %cst_18 = arith.constant 0.000000e+00 : f32
    %26 = vector.broadcast %cst_18 : f32 to vector<128x64xf32>
    %27 = arith.maximumf %25, %26 : vector<128x64xf32>
    %28 = arith.truncf %27 : vector<128x64xf32> to vector<128x64xbf16>
    %c0_19 = arith.constant 0 : index
    %c0_20 = arith.constant 0 : index
    %29 = vector.load %arg7[%c0_19, %c0_20] : memref<64x128xbf16, #tpu.memory_space<vmem>>, vector<64x128xbf16>
    %cst_21 = arith.constant dense<0.000000e+00> : vector<128x128xf32>
    %30 = tpu.matmul %28, %29, %cst_21 {dimension_numbers = #tpu.dot_dimension_numbers<[1], [0], [0], [1], [0, 0, 1, 1], [], []>} : vector<128x64xbf16>, vector<64x128xbf16>, vector<128x128xf32> -> vector<128x128xf32>
    %c3 = arith.constant 3 : index
    %c0_22 = arith.constant 0 : index
    %31 = vector.load %arg2[%c3, %c0_22] : memref<4x128xf32, #tpu.memory_space<vmem>>, vector<1x128xf32>
    %32 = vector.broadcast %31 : vector<1x128xf32> to vector<128x128xf32>
    %33 = arith.addf %30, %32 : vector<128x128xf32>
    %c0_23 = arith.constant 0 : index
    %c0_24 = arith.constant 0 : index
    %34 = vector.load %arg8[%c0_23, %c0_24] : memref<128x128xf32, #tpu.memory_space<vmem>>, vector<128x128xf32>
    tpu.vector_store %arg8[%c0_23, %c0_24], %33 {strides = array<i32>} : memref<128x128xf32, #tpu.memory_space<vmem>>, vector<128x128xf32>,
    return
  }
  func.func @transform_0(%arg0: i32) -> (i32, i32) {
    %c0_i32 = arith.constant 0 : i32
    %c0_i32_0 = arith.constant 0 : i32
    return %arg0, %c0_i32 : i32, i32
  }
  func.func @transform_1(%arg0: i32) -> (i32, i32) {
    %c0_i32 = arith.constant 0 : i32
    %c0_i32_0 = arith.constant 0 : i32
    %c0_i32_1 = arith.constant 0 : i32
    return %c0_i32, %c0_i32_0 : i32, i32
  }
  func.func @transform_2(%arg0: i32) -> (i32, i32) {
    %c0_i32 = arith.constant 0 : i32
    %c0_i32_0 = arith.constant 0 : i32
    %c0_i32_1 = arith.constant 0 : i32
    return %c0_i32, %c0_i32_0 : i32, i32
  }
  func.func @transform_3(%arg0: i32) -> (i32, i32) {
    %c0_i32 = arith.constant 0 : i32
    %c0_i32_0 = arith.constant 0 : i32
    %c0_i32_1 = arith.constant 0 : i32
    return %c0_i32, %c0_i32_0 : i32, i32
  }
  func.func @transform_4(%arg0: i32) -> (i32, i32) {
    %c0_i32 = arith.constant 0 : i32
    %c0_i32_0 = arith.constant 0 : i32
    %c0_i32_1 = arith.constant 0 : i32
    return %c0_i32, %c0_i32_0 : i32, i32
  }
  func.func @transform_5(%arg0: i32) -> (i32, i32) {
    %c0_i32 = arith.constant 0 : i32
    %c0_i32_0 = arith.constant 0 : i32
    %c0_i32_1 = arith.constant 0 : i32
    return %c0_i32, %c0_i32_0 : i32, i32
  }
  func.func @transform_6(%arg0: i32) -> (i32, i32) {
    %c0_i32 = arith.constant 0 : i32
    %c0_i32_0 = arith.constant 0 : i32
    %c0_i32_1 = arith.constant 0 : i32
    return %c0_i32, %c0_i32_0 : i32, i32
  }
  func.func @transform_7(%arg0: i32) -> (i32, i32) {
    %c0_i32 = arith.constant 0 : i32
    %c0_i32_0 = arith.constant 0 : i32
    return %arg0, %c0_i32 : i32, i32
  }
}

</mosaic_0001>

<llo_original>
// kernel: tpu_custom_call.1
$region0: #{tpu_custom_call.1}
  #allocation0 [shape = 'u32[]', space=smem, size = 0x4, offset = 0x4, fixed_abs, tag = 'smem constant byte address 0x4 - core index']
  #allocation1 [shape = 'u32[72,128]{1,0:T(1,128)}', space=vmem, size = 0x9000, scoped, tag = 'internal scratch']
  %s0 = inlined_call_operand.vmem [shape: f32[128,32], index: 0, kind: input, shape index: {}]
  %s1 = inlined_call_operand.vmem [shape: f32[4,128], index: 1, kind: input, shape index: {}]
  %s2 = inlined_call_operand.vmem [shape: bf16[32,64], index: 2, kind: input, shape index: {}]
  %s3 = inlined_call_operand.vmem [shape: bf16[64,64], index: 3, kind: input, shape index: {}]
  %s4 = inlined_call_operand.vmem [shape: bf16[64,64], index: 4, kind: input, shape index: {}]
  %s5 = inlined_call_operand.vmem [shape: bf16[32,64], index: 5, kind: input, shape index: {}]
  %s6 = inlined_call_operand.vmem [shape: bf16[64,128], index: 6, kind: input, shape index: {}]
  %s7 = inlined_call_operand.hbm [shape: f32[128,128], index: 7, kind: output, shape index: {}]
  %s8 = sld [smem:[#allocation0]]
  $region38: #{tpu_custom_call.1} parent=0
    _
  %s10 = ssub.s32 1, %s8
  %s11 = scalar_select 0, %s10, %s8
  $region1: #{tpu_custom_call.1} parent=0
    #allocation2 [shape = 'u8[65536]{0}', space=vmem, size = 0x10000, scoped, tag = 'output window, operand 0, single buffered']
    #allocation3 [shape = 's32[1]{0}', space=sflag, size = 0x4, scoped, tag = 'scoped memory for tpu_custom_call.1']
    %12 = vsyncpa [#allocation3], 0
    // Predicated region
    $region2: #{tpu_custom_call.1} parent=1 // pred_check
      _
    $region3: #{tpu_custom_call.1} parent=1 // pred_check_branch
      %14 = sbr.rel (0) target = $region5
    $region4: #{tpu_custom_call.1} parent=1 // pred_region
      _
    $region5: #{tpu_custom_call.1} parent=1 // pred_fallthru
      _
    // Predicated region
    $region6: #{tpu_custom_call.1} parent=1 // pred_check
      _
    $region7: #{tpu_custom_call.1} parent=1 // pred_check_branch
      %16 = sbr.rel (0) target = $region9
    $region8: #{tpu_custom_call.1} parent=1 // pred_region
      _
    $region9: #{tpu_custom_call.1} parent=1 // pred_fallthru
      _
    // Predicated region
    $region10: #{tpu_custom_call.1} parent=1 // pred_check
      _
    $region11: #{tpu_custom_call.1} parent=1 // pred_check_branch
      %18 = sbr.rel (0) target = $region13
    $region12: #{tpu_custom_call.1} parent=1 // pred_region
      _
    $region13: #{tpu_custom_call.1} parent=1 // pred_fallthru
      _
    // Predicated region
    $region14: #{tpu_custom_call.1} parent=1 // pred_check
      _
    $region15: #{tpu_custom_call.1} parent=1 // pred_check_branch
      %20 = sbr.rel (0) target = $region17
    $region16: #{tpu_custom_call.1} parent=1 // pred_region
      _
    $region17: #{tpu_custom_call.1} parent=1 // pred_fallthru
      _
    // Predicated region
    $region18: #{tpu_custom_call.1} parent=1 // pred_check
      _
    $region19: #{tpu_custom_call.1} parent=1 // pred_check_branch
      %22 = sbr.rel (0) target = $region21
    $region20: #{tpu_custom_call.1} parent=1 // pred_region
      _
    $region21: #{tpu_custom_call.1} parent=1 // pred_fallthru
      _
    // Predicated region
    $region22: #{tpu_custom_call.1} parent=1 // pred_check
      _
    $region23: #{tpu_custom_call.1} parent=1 // pred_check_branch
      %24 = sbr.rel (0) target = $region25
    $region24: #{tpu_custom_call.1} parent=1 // pred_region
      _
    $region25: #{tpu_custom_call.1} parent=1 // pred_fallthru
      _
    // Predicated region
    $region26: #{tpu_custom_call.1} parent=1 // pred_check
      _
    $region27: #{tpu_custom_call.1} parent=1 // pred_check_branch
      %26 = sbr.rel (0) target = $region29
    $region28: #{tpu_custom_call.1} parent=1 // pred_region
      _
    $region29: #{tpu_custom_call.1} parent=1 // pred_fallthru
      _
    %v28 = vld [vmem:[%s0] sm:$0xff]
    %v29 = vld [vmem:[%s0 + $0x8] sm:$0xff]
    %v30 = vld [vmem:[%s0 + $0x10] sm:$0xff]
    %v31 = vld [vmem:[%s0 + $0x18] sm:$0xff]
    %v32 = vld [vmem:[%s0 + $0x20] sm:$0xff]
    %v33 = vld [vmem:[%s0 + $0x28] sm:$0xff]
    %v34 = vld [vmem:[%s0 + $0x30] sm:$0xff]
    %v35 = vld [vmem:[%s0 + $0x38] sm:$0xff]
    %v36 = vld [vmem:[%s0 + $0x40] sm:$0xff]
    %v37 = vld [vmem:[%s0 + $0x48] sm:$0xff]
    %v38 = vld [vmem:[%s0 + $0x50] sm:$0xff]
    %v39 = vld [vmem:[%s0 + $0x58] sm:$0xff]
    %v40 = vld [vmem:[%s0 + $0x60] sm:$0xff]
    %v41 = vld [vmem:[%s0 + $0x68] sm:$0xff]
    %v42 = vld [vmem:[%s0 + $0x70] sm:$0xff]
    %v43 = vld [vmem:[%s0 + $0x78] sm:$0xff]
    %v44 = vpack.c.bf16 %v29, %v28
    %v45 = vpack.c.bf16 %v31, %v30
    %v46 = vpack.c.bf16 %v33, %v32
    %v47 = vpack.c.bf16 %v35, %v34
    %v48 = vpack.c.bf16 %v37, %v36
    %v49 = vpack.c.bf16 %v39, %v38
    %v50 = vpack.c.bf16 %v41, %v40
    %v51 = vpack.c.bf16 %v43, %v42
    %v52 = vld [vmem:[%s2] sm:$0xf]
    %v53 = vld [vmem:[%s2 + $0x4] sm:$0xf]
    %v54 = vld [vmem:[%s2 + $0x8] sm:$0xf]
    %v55 = vld [vmem:[%s2 + $0xc] sm:$0xf]
    %v56 = vld [vmem:[%s1] sm:$0x1]
    %v57 = vperm.slane %v56, 0
    %v62 = vunpack.c.l.b16 %v52
    %v63 = vunpack.c.l.b16 %v53
    %v64 = vunpack.c.l.b16 %v54
    %v65 = vunpack.c.l.b16 %v55
    %v66 = vpack.c.b16 %v63, %v62
    %v67 = vpack.c.b16 %v65, %v64
    %vm70 = vcmask 261120
    %v72 = vsel %vm70, %v44, 0
    %v75 = vsel %vm70, %v45, 0
    %v78 = vsel %vm70, %v46, 0
    %v81 = vsel %vm70, %v47, 0
    %v84 = vsel %vm70, %v48, 0
    %v87 = vsel %vm70, %v49, 0
    %v90 = vsel %vm70, %v50, 0
    %v93 = vsel %vm70, %v51, 0
    %95 = vmatpush.bf16.msra.mxu0 0
    %96 = vmatpush.bf16.msra.mxu0 0
    %97 = vmatpush.bf16.msra.mxu0 0
    %98 = vmatpush.bf16.msra.mxu0 0
    %99 = vmatpush.bf16.msra.mxu0 0
    %100 = vmatpush.bf16.msra.mxu0 0
    %101 = vmatpush.bf16.msra.mxu0 %v67
    %102 = vmatpush.bf16.msra.mxu0 %v66
    %103 = vmatmul.bf16.gmra.mxu0 %v72
    %v104 = vpop.f32.mrf.mxu0
    %v105 = vadd.f32 %v57, %v104
    %v106 = vpop.f32.mrf.mxu0
    %v107 = vadd.f32 %v57, %v106
    %108 = vmatmul.bf16.gmra.mxu0 %v75
    %v109 = vpop.f32.mrf.mxu0
    %v110 = vadd.f32 %v57, %v109
    %v111 = vpop.f32.mrf.mxu0
    %v112 = vadd.f32 %v57, %v111
    %113 = vmatmul.bf16.gmra.mxu0 %v78
    %v114 = vpop.f32.mrf.mxu0
    %v115 = vadd.f32 %v57, %v114
    %v116 = vpop.f32.mrf.mxu0
    %v117 = vadd.f32 %v57, %v116
    %118 = vmatmul.bf16.gmra.mxu0 %v81
    %v119 = vpop.f32.mrf.mxu0
    %v120 = vadd.f32 %v57, %v119
    %v121 = vpop.f32.mrf.mxu0
    %v122 = vadd.f32 %v57, %v121
    %123 = vmatmul.bf16.gmra.mxu0 %v84
    %v124 = vpop.f32.mrf.mxu0
    %v125 = vadd.f32 %v57, %v124
    %v126 = vpop.f32.mrf.mxu0
    %v127 = vadd.f32 %v57, %v126
    %128 = vmatmul.bf16.gmra.mxu0 %v87
    %v129 = vpop.f32.mrf.mxu0
    %v130 = vadd.f32 %v57, %v129
    %v131 = vpop.f32.mrf.mxu0
    %v132 = vadd.f32 %v57, %v131
    %133 = vmatmul.bf16.gmra.mxu0 %v90
    %v134 = vpop.f32.mrf.mxu0
    %v135 = vadd.f32 %v57, %v134
    %v136 = vpop.f32.mrf.mxu0
    %v137 = vadd.f32 %v57, %v136
    %138 = vmatmul.bf16.gmra.mxu0 %v93
    %v139 = vpop.f32.mrf.mxu0
    %v140 = vadd.f32 %v57, %v139
    %v141 = vpop.f32.mrf.mxu0
    %v142 = vadd.f32 %v57, %v141
    %143 = vdwg.mxu0
    %v144 = vmax.f32 %v105, 0.0
    %v145 = vmax.f32 %v107, 0.0
    %v146 = vmax.f32 %v110, 0.0
    %v147 = vmax.f32 %v112, 0.0
    %v148 = vmax.f32 %v115, 0.0
    %v149 = vmax.f32 %v117, 0.0
    %v150 = vmax.f32 %v120, 0.0
    %v151 = vmax.f32 %v122, 0.0
    %v152 = vmax.f32 %v125, 0.0
    %v153 = vmax.f32 %v127, 0.0
    %v154 = vmax.f32 %v130, 0.0
    %v155 = vmax.f32 %v132, 0.0
    %v156 = vmax.f32 %v135, 0.0
    %v157 = vmax.f32 %v137, 0.0
    %v158 = vmax.f32 %v140, 0.0
    %v159 = vmax.f32 %v142, 0.0
    %v160 = vpack.c.bf16 %v145, %v144
    %v161 = vpack.c.bf16 %v147, %v146
    %v162 = vpack.c.bf16 %v149, %v148
    %v163 = vpack.c.bf16 %v151, %v150
    %v164 = vpack.c.bf16 %v153, %v152
    %v165 = vpack.c.bf16 %v155, %v154
    %v166 = vpack.c.bf16 %v157, %v156
    %v167 = vpack.c.bf16 %v159, %v158
    %v168 = vld [vmem:[%s3] sm:$0xf]
    %v169 = vld [vmem:[%s3 + $0x4] sm:$0xf]
    %v170 = vld [vmem:[%s3 + $0x8] sm:$0xf]
    %v171 = vld [vmem:[%s3 + $0xc] sm:$0xf]
    %v172 = vld [vmem:[%s3 + $0x10] sm:$0xf]
    %v173 = vld [vmem:[%s3 + $0x14] sm:$0xf]
    %v174 = vld [vmem:[%s3 + $0x18] sm:$0xf]
    %v175 = vld [vmem:[%s3 + $0x1c] sm:$0xf]
    %v176 = vld [vmem:[%s1 + $0x1] sm:$0x1]
    %v177 = vperm.slane %v176, 0
    %v186 = vunpack.c.l.b16 %v168
    %v187 = vunpack.c.l.b16 %v169
    %v188 = vunpack.c.l.b16 %v170
    %v189 = vunpack.c.l.b16 %v171
    %v190 = vunpack.c.l.b16 %v172
    %v191 = vunpack.c.l.b16 %v173
    %v192 = vunpack.c.l.b16 %v174
    %v193 = vunpack.c.l.b16 %v175
    %v194 = vpack.c.b16 %v187, %v186
    %v195 = vpack.c.b16 %v189, %v188
    %v196 = vpack.c.b16 %v191, %v190
    %v197 = vpack.c.b16 %v193, %v192
    %vm202 = vcmask 523264
    %v204 = vsel %vm202, %v160, 0
    %v207 = vsel %vm202, %v161, 0
    %v210 = vsel %vm202, %v162, 0
    %v213 = vsel %vm202, %v163, 0
    %v216 = vsel %vm202, %v164, 0
    %v219 = vsel %vm202, %v165, 0
    %v222 = vsel %vm202, %v166, 0
    %v225 = vsel %vm202, %v167, 0
    %227 = vmatpush.bf16.msra.mxu0 0
    %228 = vmatpush.bf16.msra.mxu0 0
    %229 = vmatpush.bf16.msra.mxu0 0
    %230 = vmatpush.bf16.msra.mxu0 0
    %231 = vmatpush.bf16.msra.mxu0 %v197
    %232 = vmatpush.bf16.msra.mxu0 %v196
    %233 = vmatpush.bf16.msra.mxu0 %v195
    %234 = vmatpush.bf16.msra.mxu0 %v194
    %235 = vmatmul.bf16.gmra.mxu0 %v204
    %v236 = vpop.f32.mrf.mxu0
    %v237 = vadd.f32 %v177, %v236
    %v238 = vpop.f32.mrf.mxu0
    %v239 = vadd.f32 %v177, %v238
    %240 = vmatmul.bf16.gmra.mxu0 %v207
    %v241 = vpop.f32.mrf.mxu0
    %v242 = vadd.f32 %v177, %v241
    %v243 = vpop.f32.mrf.mxu0
    %v244 = vadd.f32 %v177, %v243
    %245 = vmatmul.bf16.gmra.mxu0 %v210
    %v246 = vpop.f32.mrf.mxu0
    %v247 = vadd.f32 %v177, %v246
    %v248 = vpop.f32.mrf.mxu0
    %v249 = vadd.f32 %v177, %v248
    %250 = vmatmul.bf16.gmra.mxu0 %v213
    %v251 = vpop.f32.mrf.mxu0
    %v252 = vadd.f32 %v177, %v251
    %v253 = vpop.f32.mrf.mxu0
    %v254 = vadd.f32 %v177, %v253
    %255 = vmatmul.bf16.gmra.mxu0 %v216
    %v256 = vpop.f32.mrf.mxu0
    %v257 = vadd.f32 %v177, %v256
    %v258 = vpop.f32.mrf.mxu0
    %v259 = vadd.f32 %v177, %v258
    %260 = vmatmul.bf16.gmra.mxu0 %v219
    %v261 = vpop.f32.mrf.mxu0
    %v262 = vadd.f32 %v177, %v261
    %v263 = vpop.f32.mrf.mxu0
    %v264 = vadd.f32 %v177, %v263
    %265 = vmatmul.bf16.gmra.mxu0 %v222
    %v266 = vpop.f32.mrf.mxu0
    %v267 = vadd.f32 %v177, %v266
    %v268 = vpop.f32.mrf.mxu0
    %v269 = vadd.f32 %v177, %v268
    %270 = vmatmul.bf16.gmra.mxu0 %v225
    %v271 = vpop.f32.mrf.mxu0
    %v272 = vadd.f32 %v177, %v271
    %v273 = vpop.f32.mrf.mxu0
    %v274 = vadd.f32 %v177, %v273
    %275 = vdwg.mxu0
    %v276 = vmax.f32 %v237, 0.0
    %v277 = vmax.f32 %v239, 0.0
    %v278 = vmax.f32 %v242, 0.0
    %v279 = vmax.f32 %v244, 0.0
    %v280 = vmax.f32 %v247, 0.0
    %v281 = vmax.f32 %v249, 0.0
    %v282 = vmax.f32 %v252, 0.0
    %v283 = vmax.f32 %v254, 0.0
    %v284 = vmax.f32 %v257, 0.0
    %v285 = vmax.f32 %v259, 0.0
    %v286 = vmax.f32 %v262, 0.0
    %v287 = vmax.f32 %v264, 0.0
    %v288 = vmax.f32 %v267, 0.0
    %v289 = vmax.f32 %v269, 0.0
    %v290 = vmax.f32 %v272, 0.0
    %v291 = vmax.f32 %v274, 0.0
    %v292 = vpack.c.bf16 %v277, %v276
    %v293 = vpack.c.bf16 %v279, %v278
    %v294 = vpack.c.bf16 %v281, %v280
    %v295 = vpack.c.bf16 %v283, %v282
    %v296 = vpack.c.bf16 %v285, %v284
    %v297 = vpack.c.bf16 %v287, %v286
    %v298 = vpack.c.bf16 %v289, %v288
    %v299 = vpack.c.bf16 %v291, %v290
    %v300 = vld [vmem:[%s4] sm:$0xf]
    %v301 = vld [vmem:[%s4 + $0x4] sm:$0xf]
    %v302 = vld [vmem:[%s4 + $0x8] sm:$0xf]
    %v303 = vld [vmem:[%s4 + $0xc] sm:$0xf]
    %v304 = vld [vmem:[%s4 + $0x10] sm:$0xf]
    %v305 = vld [vmem:[%s4 + $0x14] sm:$0xf]
    %v306 = vld [vmem:[%s4 + $0x18] sm:$0xf]
    %v307 = vld [vmem:[%s4 + $0x1c] sm:$0xf]
    %v308 = vld [vmem:[%s5] sm:$0xf]
    %v309 = vld [vmem:[%s5 + $0x4] sm:$0xf]
    %v310 = vld [vmem:[%s5 + $0x8] sm:$0xf]
    %v311 = vld [vmem:[%s5 + $0xc] sm:$0xf]
    %v316 = vunpack.c.l.b16 %v308
    %v317 = vunpack.c.l.b16 %v309
    %v318 = vunpack.c.l.b16 %v310
    %v319 = vunpack.c.l.b16 %v311
    %v320 = vpack.c.b16 %v317, %v316
    %v321 = vpack.c.b16 %v319, %v318
    %324 = vmatpush.bf16.msra.mxu0 0
    %325 = vmatpush.bf16.msra.mxu0 0
    %326 = vmatpush.bf16.msra.mxu0 0
    %327 = vmatpush.bf16.msra.mxu0 0
    %328 = vmatpush.bf16.msra.mxu0 0
    %329 = vmatpush.bf16.msra.mxu0 0
    %330 = vmatpush.bf16.msra.mxu0 %v321
    %331 = vmatpush.bf16.msra.mxu0 %v320
    %332 = vmatmul.bf16.gmra.mxu0 %v72
    %v333 = vpop.f32.mrf.mxu0
    %v334 = vadd.f32 0.0, %v333
    %v335 = vpop.f32.mrf.mxu0
    %v336 = vadd.f32 0.0, %v335
    %337 = vmatmul.bf16.gmra.mxu0 %v75
    %v338 = vpop.f32.mrf.mxu0
    %v339 = vadd.f32 0.0, %v338
    %v340 = vpop.f32.mrf.mxu0
    %v341 = vadd.f32 0.0, %v340
    %342 = vmatmul.bf16.gmra.mxu0 %v78
    %v343 = vpop.f32.mrf.mxu0
    %v344 = vadd.f32 0.0, %v343
    %v345 = vpop.f32.mrf.mxu0
    %v346 = vadd.f32 0.0, %v345
    %347 = vmatmul.bf16.gmra.mxu0 %v81
    %v348 = vpop.f32.mrf.mxu0
    %v349 = vadd.f32 0.0, %v348
    %v350 = vpop.f32.mrf.mxu0
    %v351 = vadd.f32 0.0, %v350
    %352 = vmatmul.bf16.gmra.mxu0 %v84
    %v353 = vpop.f32.mrf.mxu0
    %v354 = vadd.f32 0.0, %v353
    %v355 = vpop.f32.mrf.mxu0
    %v356 = vadd.f32 0.0, %v355
    %357 = vmatmul.bf16.gmra.mxu0 %v87
    %v358 = vpop.f32.mrf.mxu0
    %v359 = vadd.f32 0.0, %v358
    %v360 = vpop.f32.mrf.mxu0
    %v361 = vadd.f32 0.0, %v360
    %362 = vmatmul.bf16.gmra.mxu0 %v90
    %v363 = vpop.f32.mrf.mxu0
    %v364 = vadd.f32 0.0, %v363
    %v365 = vpop.f32.mrf.mxu0
    %v366 = vadd.f32 0.0, %v365
    %367 = vmatmul.bf16.gmra.mxu0 %v93
    %v368 = vpop.f32.mrf.mxu0
    %v369 = vadd.f32 0.0, %v368
    %v370 = vpop.f32.mrf.mxu0
    %v371 = vadd.f32 0.0, %v370
    %372 = vdwg.mxu0
    %v381 = vunpack.c.l.b16 %v300
    %v382 = vunpack.c.l.b16 %v301
    %v383 = vunpack.c.l.b16 %v302
    %v384 = vunpack.c.l.b16 %v303
    %v385 = vunpack.c.l.b16 %v304
    %v386 = vunpack.c.l.b16 %v305
    %v387 = vunpack.c.l.b16 %v306
    %v388 = vunpack.c.l.b16 %v307
    %v389 = vpack.c.b16 %v382, %v381
    %v390 = vpack.c.b16 %v384, %v383
    %v391 = vpack.c.b16 %v386, %v385
    %v392 = vpack.c.b16 %v388, %v387
    %v398 = vsel %vm202, %v292, 0
    %v401 = vsel %vm202, %v293, 0
    %v404 = vsel %vm202, %v294, 0
    %v407 = vsel %vm202, %v295, 0
    %v410 = vsel %vm202, %v296, 0
    %v413 = vsel %vm202, %v297, 0
    %v416 = vsel %vm202, %v298, 0
    %v419 = vsel %vm202, %v299, 0
    %421 = vmatpush.bf16.msra.mxu0 0
    %422 = vmatpush.bf16.msra.mxu0 0
    %423 = vmatpush.bf16.msra.mxu0 0
    %424 = vmatpush.bf16.msra.mxu0 0
    %425 = vmatpush.bf16.msra.mxu0 %v392
    %426 = vmatpush.bf16.msra.mxu0 %v391
    %427 = vmatpush.bf16.msra.mxu0 %v390
    %428 = vmatpush.bf16.msra.mxu0 %v389
    %429 = vmatmul.bf16.gmra.mxu0 %v398
    %v430 = vpop.f32.mrf.mxu0
    %v431 = vadd.f32 %v334, %v430
    %v432 = vpop.f32.mrf.mxu0
    %v433 = vadd.f32 %v336, %v432
    %434 = vmatmul.bf16.gmra.mxu0 %v401
    %v435 = vpop.f32.mrf.mxu0
    %v436 = vadd.f32 %v339, %v435
    %v437 = vpop.f32.mrf.mxu0
    %v438 = vadd.f32 %v341, %v437
    %439 = vmatmul.bf16.gmra.mxu0 %v404
    %v440 = vpop.f32.mrf.mxu0
    %v441 = vadd.f32 %v344, %v440
    %v442 = vpop.f32.mrf.mxu0
    %v443 = vadd.f32 %v346, %v442
    %444 = vmatmul.bf16.gmra.mxu0 %v407
    %v445 = vpop.f32.mrf.mxu0
    %v446 = vadd.f32 %v349, %v445
    %v447 = vpop.f32.mrf.mxu0
    %v448 = vadd.f32 %v351, %v447
    %449 = vmatmul.bf16.gmra.mxu0 %v410
    %v450 = vpop.f32.mrf.mxu0
    %v451 = vadd.f32 %v354, %v450
    %v452 = vpop.f32.mrf.mxu0
    %v453 = vadd.f32 %v356, %v452
    %454 = vmatmul.bf16.gmra.mxu0 %v413
    %v455 = vpop.f32.mrf.mxu0
    %v456 = vadd.f32 %v359, %v455
    %v457 = vpop.f32.mrf.mxu0
    %v458 = vadd.f32 %v361, %v457
    %459 = vmatmul.bf16.gmra.mxu0 %v416
    %v460 = vpop.f32.mrf.mxu0
    %v461 = vadd.f32 %v364, %v460
    %v462 = vpop.f32.mrf.mxu0
    %v463 = vadd.f32 %v366, %v462
    %464 = vmatmul.bf16.gmra.mxu0 %v419
    %v465 = vpop.f32.mrf.mxu0
    %v466 = vadd.f32 %v369, %v465
    %v467 = vpop.f32.mrf.mxu0
    %v468 = vadd.f32 %v371, %v467
    %469 = vdwg.mxu0
    %v470 = vld [vmem:[%s1 + $0x2] sm:$0x1]
    %v471 = vperm.slane %v470, 0
    %v472 = vadd.f32 %v431, %v471
    %v473 = vadd.f32 %v433, %v471
    %v474 = vadd.f32 %v436, %v471
    %v475 = vadd.f32 %v438, %v471
    %v476 = vadd.f32 %v441, %v471
    %v477 = vadd.f32 %v443, %v471
    %v478 = vadd.f32 %v446, %v471
    %v479 = vadd.f32 %v448, %v471
    %v480 = vadd.f32 %v451, %v471
    %v481 = vadd.f32 %v453, %v471
    %v482 = vadd.f32 %v456, %v471
    %v483 = vadd.f32 %v458, %v471
    %v484 = vadd.f32 %v461, %v471
    %v485 = vadd.f32 %v463, %v471
    %v486 = vadd.f32 %v466, %v471
    %v487 = vadd.f32 %v468, %v471
    %v488 = vmax.f32 %v472, 0.0
    %v489 = vmax.f32 %v473, 0.0
    %v490 = vmax.f32 %v474, 0.0
    %v491 = vmax.f32 %v475, 0.0
    %v492 = vmax.f32 %v476, 0.0
    %v493 = vmax.f32 %v477, 0.0
    %v494 = vmax.f32 %v478, 0.0
    %v495 = vmax.f32 %v479, 0.0
    %v496 = vmax.f32 %v480, 0.0
    %v497 = vmax.f32 %v481, 0.0
    %v498 = vmax.f32 %v482, 0.0
    %v499 = vmax.f32 %v483, 0.0
    %v500 = vmax.f32 %v484, 0.0
    %v501 = vmax.f32 %v485, 0.0
    %v502 = vmax.f32 %v486, 0.0
    %v503 = vmax.f32 %v487, 0.0
    %v504 = vpack.c.bf16 %v489, %v488
    %v505 = vpack.c.bf16 %v491, %v490
    %v506 = vpack.c.bf16 %v493, %v492
    %v507 = vpack.c.bf16 %v495, %v494
    %v508 = vpack.c.bf16 %v497, %v496
    %v509 = vpack.c.bf16 %v499, %v498
    %v510 = vpack.c.bf16 %v501, %v500
    %v511 = vpack.c.bf16 %v503, %v502
    %v512 = vld [vmem:[%s6] sm:$0xf]
    %v513 = vld [vmem:[%s6 + $0x4] sm:$0xf]
    %v514 = vld [vmem:[%s6 + $0x8] sm:$0xf]
    %v515 = vld [vmem:[%s6 + $0xc] sm:$0xf]
    %v516 = vld [vmem:[%s6 + $0x10] sm:$0xf]
    %v517 = vld [vmem:[%s6 + $0x14] sm:$0xf]
    %v518 = vld [vmem:[%s6 + $0x18] sm:$0xf]
    %v519 = vld [vmem:[%s6 + $0x1c] sm:$0xf]
    %v520 = vld [vmem:[%s1 + $0x3] sm:$0x1]
    %v521 = vperm.slane %v520, 0
    %v530 = vunpack.c.l.b16 %v512
    %v531 = vunpack.c.l.b16 %v513
    %v532 = vunpack.c.l.b16 %v514
    %v533 = vunpack.c.l.b16 %v515
    %v534 = vunpack.c.l.b16 %v516
    %v535 = vunpack.c.l.b16 %v517
    %v536 = vunpack.c.l.b16 %v518
    %v537 = vunpack.c.l.b16 %v519
    %v538 = vpack.c.b16 %v531, %v530
    %v539 = vpack.c.b16 %v533, %v532
    %v540 = vpack.c.b16 %v535, %v534
    %v541 = vpack.c.b16 %v537, %v536
    %v547 = vsel %vm202, %v504, 0
    %v550 = vsel %vm202, %v505, 0
    %v553 = vsel %vm202, %v506, 0
    %v556 = vsel %vm202, %v507, 0
    %v559 = vsel %vm202, %v508, 0
    %v562 = vsel %vm202, %v509, 0
    %v565 = vsel %vm202, %v510, 0
    %v568 = vsel %vm202, %v511, 0
    %570 = vmatpush.bf16.msra.mxu0 0
    %571 = vmatpush.bf16.msra.mxu0 0
    %572 = vmatpush.bf16.msra.mxu0 0
    %573 = vmatpush.bf16.msra.mxu0 0
    %574 = vmatpush.bf16.msra.mxu0 %v541
    %575 = vmatpush.bf16.msra.mxu0 %v540
    %576 = vmatpush.bf16.msra.mxu0 %v539
    %577 = vmatpush.bf16.msra.mxu0 %v538
    %578 = vmatmul.bf16.gmra.mxu0 %v547
    %v579 = vpop.f32.mrf.mxu0
    %v580 = vadd.f32 %v521, %v579
    %v581 = vpop.f32.mrf.mxu0
    %v582 = vadd.f32 %v521, %v581
    %583 = vmatmul.bf16.gmra.mxu0 %v550
    %v584 = vpop.f32.mrf.mxu0
    %v585 = vadd.f32 %v521, %v584
    %v586 = vpop.f32.mrf.mxu0
    %v587 = vadd.f32 %v521, %v586
    %588 = vmatmul.bf16.gmra.mxu0 %v553
    %v589 = vpop.f32.mrf.mxu0
    %v590 = vadd.f32 %v521, %v589
    %v591 = vpop.f32.mrf.mxu0
    %v592 = vadd.f32 %v521, %v591
    %593 = vmatmul.bf16.gmra.mxu0 %v556
    %v594 = vpop.f32.mrf.mxu0
    %v595 = vadd.f32 %v521, %v594
    %v596 = vpop.f32.mrf.mxu0
    %v597 = vadd.f32 %v521, %v596
    %598 = vmatmul.bf16.gmra.mxu0 %v559
    %v599 = vpop.f32.mrf.mxu0
    %v600 = vadd.f32 %v521, %v599
    %v601 = vpop.f32.mrf.mxu0
    %v602 = vadd.f32 %v521, %v601
    %603 = vmatmul.bf16.gmra.mxu0 %v562
    %v604 = vpop.f32.mrf.mxu0
    %v605 = vadd.f32 %v521, %v604
    %v606 = vpop.f32.mrf.mxu0
    %v607 = vadd.f32 %v521, %v606
    %608 = vmatmul.bf16.gmra.mxu0 %v565
    %v609 = vpop.f32.mrf.mxu0
    %v610 = vadd.f32 %v521, %v609
    %v611 = vpop.f32.mrf.mxu0
    %v612 = vadd.f32 %v521, %v611
    %613 = vmatmul.bf16.gmra.mxu0 %v568
    %v614 = vpop.f32.mrf.mxu0
    %v615 = vadd.f32 %v521, %v614
    %v616 = vpop.f32.mrf.mxu0
    %v617 = vadd.f32 %v521, %v616
    %618 = vdwg.mxu0
    %619 = vst [vmem:[#allocation2] sm:$0xff] %v580
    %620 = vst [vmem:[#allocation2 + $0x8] sm:$0xff] %v582
    %621 = vst [vmem:[#allocation2 + $0x10] sm:$0xff] %v585
    %622 = vst [vmem:[#allocation2 + $0x18] sm:$0xff] %v587
    %623 = vst [vmem:[#allocation2 + $0x20] sm:$0xff] %v590
    %624 = vst [vmem:[#allocation2 + $0x28] sm:$0xff] %v592
    %625 = vst [vmem:[#allocation2 + $0x30] sm:$0xff] %v595
    %626 = vst [vmem:[#allocation2 + $0x38] sm:$0xff] %v597
    %627 = vst [vmem:[#allocation2 + $0x40] sm:$0xff] %v600
    %628 = vst [vmem:[#allocation2 + $0x48] sm:$0xff] %v602
    %629 = vst [vmem:[#allocation2 + $0x50] sm:$0xff] %v605
    %630 = vst [vmem:[#allocation2 + $0x58] sm:$0xff] %v607
    %631 = vst [vmem:[#allocation2 + $0x60] sm:$0xff] %v610
    %632 = vst [vmem:[#allocation2 + $0x68] sm:$0xff] %v612
    %633 = vst [vmem:[#allocation2 + $0x70] sm:$0xff] %v615
    %634 = vst [vmem:[#allocation2 + $0x78] sm:$0xff] %v617
    // Predicated region
    $region30: #{tpu_custom_call.1} parent=1 // pred_check
      _
    $region31: #{tpu_custom_call.1} parent=1 // pred_check_branch
      %636 = sbr.rel (0) target = $region33
    $region32: #{tpu_custom_call.1} parent=1 // pred_region
      %638 = vsyncadd [#allocation3], 0
      %s639 = sshll.u32 [#allocation2], 4
      %s640 = int_to_ptr.vmem [resolvable:$true] %s639
      %s641 = sshll.u32 %s7, 4
      %s642 = int_to_ptr.hbm [resolvable:$true] %s641
      %647 = dma.vmem_to_hbm [thread:$0]  %s640, 2048, %s642, [#allocation3], 128, 128, 8
    $region33: #{tpu_custom_call.1} parent=1 // pred_fallthru
      _
    // Predicated region
    $region34: #{tpu_custom_call.1} parent=1 // pred_check
      _
    $region35: #{tpu_custom_call.1} parent=1 // pred_check_branch
      %649 = sbr.rel (0) target = $region37
    $region36: #{tpu_custom_call.1} parent=1 // pred_region
      %651 = dma.done [#allocation3], 2048
    $region37: #{tpu_custom_call.1} parent=1 // pred_fallthru
      _
    %652 = vsyncpa [#allocation3], 1

</llo_original>
